<compile_context>
chip_gen: v7x
topology: tpu7x:2x2x1
jax: 0.10.0
libtpu: 0.0.40
codegen_flags: <defaults>
</compile_context>

<pallas_src>
from functools import partial

import jax
import jax.numpy as jnp
from jax import lax
from jax.experimental import pallas as pl
from jax.experimental.pallas import tpu as pltpu


def _round_up(x, m):
    return ((x + m - 1) // m) * m


def _vmem_capacity_bytes(default=64 * 1024 * 1024):
    """Physical VMEM per TensorCore; conservative (v7x-sized) fallback."""
    try:
        info = pltpu.get_tpu_info()
        cap = getattr(info, "vmem_capacity_bytes", None)
        if cap:
            return int(cap)
    except Exception:
        pass
    return default


# ---------------------------------------------------------------------------
# Path A (fast path): the whole reduction axis (H*W) fits in one column block.
# 1-D grid over row tiles of the (N*C, H*W) view; no scratch, no phases.
# ---------------------------------------------------------------------------
def _gap_onepass_kernel(x_ref, o_ref, *, inv_hw):
    x = x_ref[...].astype(jnp.float32)
    s = jnp.sum(x, axis=1, keepdims=True)
    o_ref[...] = (s * inv_hw).astype(o_ref.dtype)


# ---------------------------------------------------------------------------
# Path B: H*W too large for a single block -> tile the reduction axis too.
# Lane-dense (tr, 128) f32 accumulator; hot loop is elementwise VPU adds only.
# The ragged last column tile (if any) is masked in-kernel, so no HBM padding.
# ---------------------------------------------------------------------------
def _gap_multipass_kernel(x_ref, o_ref, acc_ref, *, inv_hw, cols, tc, nj):
    j = pl.program_id(1)

    @pl.when(j == 0)
    def _():
        acc_ref[...] = jnp.zeros_like(acc_ref)

    def accumulate(x):
        # x: (tr, tc) f32, tc a multiple of 128.  Fold the 128-lane chunks
        # together with elementwise adds (VPU), then one RMW of the acc.
        partial_sum = x[:, 0:128]
        for c in range(1, tc // 128):
            partial_sum = partial_sum + x[:, c * 128:(c + 1) * 128]
        acc_ref[...] += partial_sum

    if cols % tc == 0:
        accumulate(x_ref[...].astype(jnp.float32))
    else:
        valid = cols - (nj - 1) * tc  # static Python int, 0 < valid < tc

        @pl.when(j < nj - 1)
        def _():
            accumulate(x_ref[...].astype(jnp.float32))

        @pl.when(j == nj - 1)
        def _():
            x = x_ref[...].astype(jnp.float32)
            ids = lax.broadcasted_iota(jnp.int32, x.shape, 1)
            accumulate(jnp.where(ids < valid, x, 0.0))

    @pl.when(j == nj - 1)
    def _():
        s = jnp.sum(acc_ref[...], axis=1, keepdims=True)
        o_ref[...] = (s * inv_hw).astype(o_ref.dtype)


def global_avg_pool(x_nchw):
    """GlobalAvgPooling: (N, C, H, W) -> (N, C), mean over the spatial dims."""
    N, C, H, W = x_nchw.shape
    rows, cols = N * C, H * W
    itemsize = jnp.dtype(x_nchw.dtype).itemsize
    inv_hw = 1.0 / float(cols)

    # Sublane alignment for the row (second-minor) axis: 8 for 32-bit,
    # 16 for 16-bit, 32 for 8-bit dtypes (packed sublanes).
    row_align = 8 * max(1, 4 // itemsize)

    # Generation-aware VMEM budget: ~1/4 of physical VMEM per input buffer
    # (double buffering => ~1/2 total), scoped limit raised to ~3/4.
    vmem_cap = _vmem_capacity_bytes()
    vmem_limit = int(vmem_cap * 3 // 4)
    tile_budget = vmem_cap // 4  # bytes per single input buffer

    # Lane-dense (N*C, H*W) view of the input -- contiguous, free reshape.
    x2 = x_nchw.reshape(rows, cols)

    # True (unpadded) traffic for XLA's scheduler.
    cost = pl.CostEstimate(
        flops=rows * cols,
        transcendentals=0,
        bytes_accessed=rows * cols * itemsize + rows * itemsize,
    )

    row_bytes = cols * itemsize

    if row_align * row_bytes <= tile_budget:
        # -------- Path A: one column block covers all of H*W --------
        tc = cols
        if rows <= row_align:
            tr = rows  # full-extent row block (legal even if not 8-aligned)
        else:
            tr = max(row_align, (tile_budget // row_bytes) // row_align * row_align)
            tr = min(tr, _round_up(rows, row_align))
            if rows >= 2 * row_align:
                # Keep >= 2 row tiles so megacore (v7x: 2 TCs) can shard them.
                tr = min(tr, _round_up(pl.cdiv(rows, 2), row_align))
        n_row_tiles = pl.cdiv(rows, tr)

        out = pl.pallas_call(
            partial(_gap_onepass_kernel, inv_hw=inv_hw),
            out_shape=jax.ShapeDtypeStruct((rows, 1), x_nchw.dtype),
            grid_spec=pltpu.PrefetchScalarGridSpec(
                num_scalar_prefetch=0,
                grid=(n_row_tiles,),
                in_specs=[pl.BlockSpec((tr, tc), lambda i: (i, 0))],
                out_specs=pl.BlockSpec((tr, 1), lambda i: (i, 0)),
            ),
            compiler_params=pltpu.CompilerParams(
                dimension_semantics=("parallel",),
                vmem_limit_bytes=vmem_limit,
            ),
            cost_estimate=cost,
        )(x2)
    else:
        # -------- Path B: tile the reduction (H*W) axis as well --------
        tc = max(128, (tile_budget // (row_align * itemsize)) // 128 * 128)
        tc = min(tc, _round_up(cols, 128))
        tr = max(row_align, (tile_budget // (tc * itemsize)) // row_align * row_align)
        tr = min(tr, _round_up(rows, row_align))
        if rows >= 2 * row_align:
            tr = min(tr, _round_up(pl.cdiv(rows, 2), row_align))
        n_row_tiles = pl.cdiv(rows, tr)
        n_col_tiles = pl.cdiv(cols, tc)

        out = pl.pallas_call(
            partial(_gap_multipass_kernel, inv_hw=inv_hw, cols=cols, tc=tc,
                    nj=n_col_tiles),
            out_shape=jax.ShapeDtypeStruct((rows, 1), x_nchw.dtype),
            grid_spec=pltpu.PrefetchScalarGridSpec(
                num_scalar_prefetch=0,
                grid=(n_row_tiles, n_col_tiles),
                in_specs=[pl.BlockSpec((tr, tc), lambda i, j: (i, j))],
                out_specs=pl.BlockSpec((tr, 1), lambda i, j: (i, 0)),
                scratch_shapes=[pltpu.VMEM((tr, 128), jnp.float32)],
            ),
            compiler_params=pltpu.CompilerParams(
                dimension_semantics=("parallel", "arbitrary"),
                vmem_limit_bytes=vmem_limit,
            ),
            cost_estimate=cost,
        )(x2)

    return out[:, 0].reshape(N, C)


if __name__ == "__main__":
    # Small NCHW input consistent with the module.
    N, C, H, W = 2, 4, 16, 16

    key = jax.random.PRNGKey(0)
    x = jax.random.normal(key, (N, C, H, W), dtype=jnp.float32)

    out = global_avg_pool(x)
    jax.block_until_ready(out)

    ref = jnp.mean(x, axis=(2, 3))
    assert out.shape == (N, C)
    assert jnp.allclose(out, ref, atol=1e-5, rtol=1e-5)
    print("KERNEL_OK")
</pallas_src>

<mosaic_0001>
module attributes {stable_mosaic.version = 11 : i64} {
  func.func @_gap_onepass_kernel(%arg0: i32, %arg1: memref<8x256xf32, #tpu.memory_space<vmem>>, %arg2: memref<8x1xf32, #tpu.memory_space<vmem>>) attributes {dimension_semantics = [#tpu.dimension_semantics<parallel>], iteration_bounds = array<i64: 1>, scalar_prefetch = 0 : i64, scratch_operands = 0 : i64, tpu.core_type = #tpu.core_type<tc>, window_params = [{transform_indices = @transform_0, window_bounds = array<i64: 8, 256>}, {transform_indices = @transform_1, window_bounds = array<i64: 8, 1>}]} {
    %c0 = arith.constant 0 : index
    %c0_0 = arith.constant 0 : index
    %0 = vector.load %arg1[%c0, %c0_0] : memref<8x256xf32, #tpu.memory_space<vmem>>, vector<8x256xf32>
    %cst = arith.constant dense<0.000000e+00> : vector<8xf32>
    %1 = vector.multi_reduction <add>, %0, %cst [1] : vector<8x256xf32> to vector<8xf32>
    %2 = vector.shape_cast %1 : vector<8xf32> to vector<8x1xf32>
    %cst_1 = arith.constant 3.906250e-03 : f32
    %3 = vector.broadcast %cst_1 : f32 to vector<8x1xf32>
    %4 = arith.mulf %2, %3 : vector<8x1xf32>
    %c0_2 = arith.constant 0 : index
    %c0_3 = arith.constant 0 : index
    %5 = vector.load %arg2[%c0_2, %c0_3] : memref<8x1xf32, #tpu.memory_space<vmem>>, vector<8x1xf32>
    tpu.vector_store %arg2[%c0_2, %c0_3], %4 {strides = array<i32>} : memref<8x1xf32, #tpu.memory_space<vmem>>, vector<8x1xf32>,
    return
  }
  func.func @transform_0(%arg0: i32) -> (i32, i32) {
    %c0_i32 = arith.constant 0 : i32
    %c0_i32_0 = arith.constant 0 : i32
    return %arg0, %c0_i32 : i32, i32
  }
  func.func @transform_1(%arg0: i32) -> (i32, i32) {
    %c0_i32 = arith.constant 0 : i32
    %c0_i32_0 = arith.constant 0 : i32
    return %arg0, %c0_i32 : i32, i32
  }
}

</mosaic_0001>

<llo_original>
// kernel: tpu_custom_call.1
$region0: #{tpu_custom_call.1}
  #allocation0 [shape = 'u32[]', space=smem, size = 0x4, offset = 0x4, fixed_abs, tag = 'smem constant byte address 0x4 - core index']
  #allocation1 [shape = 'u32[144,128]{1,0:T(1,128)}', space=vmem, size = 0x12000, scoped, tag = 'internal scratch']
  %s0 = inlined_call_operand.hbm [shape: f32[8,256], index: 0, kind: input, shape index: {}]
  %s1 = inlined_call_operand.vmem [shape: f32[8,1], index: 1, kind: output, shape index: {}]
  %s2 = sld [smem:[#allocation0]]
  $region18: #{tpu_custom_call.1} parent=0
    _
  %s4 = ssub.s32 1, %s2
  %s5 = scalar_select 0, %s4, %s2
  $region1: #{tpu_custom_call.1} parent=0
    #allocation2 [shape = 'u8[8192]{0}', space=vmem, size = 0x2000, scoped, tag = 'input window, operand 0, single buffered']
    #allocation3 [shape = 's32[1]{0}', space=sflag, size = 0x4, scoped, tag = 'scoped memory for tpu_custom_call.1']
    %6 = vsyncpa [#allocation3], 0
    // Predicated region
    $region2: #{tpu_custom_call.1} parent=1 // pred_check
      _
    $region3: #{tpu_custom_call.1} parent=1 // pred_check_branch
      %8 = sbr.rel (0) target = $region5
    $region4: #{tpu_custom_call.1} parent=1 // pred_region
      %s10 = ssub.s32 256, 256
      %11 = vsyncadd [#allocation3], %s10
      %s13 = sshll.u32 [#allocation2], 4
      %s14 = int_to_ptr.vmem [resolvable:$true] %s13
      %16 = dma.hbm_to_vmem [thread:$0]  %s0, 256, %s14, [#allocation3]
    $region5: #{tpu_custom_call.1} parent=1 // pred_fallthru
      _
    // Predicated region
    $region6: #{tpu_custom_call.1} parent=1 // pred_check
      _
    $region7: #{tpu_custom_call.1} parent=1 // pred_check_branch
      %18 = sbr.rel (0) target = $region9
    $region8: #{tpu_custom_call.1} parent=1 // pred_region
      %19 = dma.done [#allocation3], 256
    $region9: #{tpu_custom_call.1} parent=1 // pred_fallthru
      _
    %v20 = vld [vmem:[#allocation2] sm:$0xff]
    %v21 = vld [vmem:[#allocation2 + $0x8] sm:$0xff]
    %v22 = vadd.f32 %v20, %v21
    %23 = vadd.xlane.f32.xlu0 %v22
    %v24 = vpop.xlane.xlu0 %23
    %v25 = vmul.f32 %v24, 0.00390625
    %vm26 = vcmask 7168
    %27 = vst.msk [vmem:[%s1] sm:$0xff] %vm26, %v25
    // Predicated region
    $region10: #{tpu_custom_call.1} parent=1 // pred_check
      _
    $region11: #{tpu_custom_call.1} parent=1 // pred_check_branch
      %29 = sbr.rel (0) target = $region13
    $region12: #{tpu_custom_call.1} parent=1 // pred_region
      _
    $region13: #{tpu_custom_call.1} parent=1 // pred_fallthru
      _
    // Predicated region
    $region14: #{tpu_custom_call.1} parent=1 // pred_check
      _
    $region15: #{tpu_custom_call.1} parent=1 // pred_check_branch
      %31 = sbr.rel (0) target = $region17
    $region16: #{tpu_custom_call.1} parent=1 // pred_region
      _
    $region17: #{tpu_custom_call.1} parent=1 // pred_fallthru
      _
    %32 = vsyncpa [#allocation3], 1

</llo_original>
